<compile_context>
chip_gen: v7x
topology: tpu7x:2x2x1
jax: 0.10.0
libtpu: 0.0.40
codegen_flags: <defaults>
</compile_context>

<pallas_src>
import functools

import jax
import jax.numpy as jnp
from jax.experimental import pallas as pl
from jax.experimental.pallas import tpu as pltpu

_LANE = 128
_SUB = 8


def _block_update(x_ref, t_ref, inter_ref, den_ref, mask):
    # Cast to f32 right after load (accumulation dtype; v5e has no bf16 VPU).
    p = jax.nn.sigmoid(x_ref[...].astype(jnp.float32))
    t = t_ref[...].astype(jnp.float32)
    if mask is not None:
        p = jnp.where(mask, p, 0.0)
        t = jnp.where(mask, t, 0.0)
    # Reduce the (block_rows, 128) block to an (8, 128) partial: summing over
    # groups of 8 sublane rows is just a chain of vreg adds (VALU, no XLU).
    inter_ref[...] += jnp.sum((t * p).reshape(-1, _SUB, _LANE), axis=0)
    den_ref[...] += jnp.sum((t + p).reshape(-1, _SUB, _LANE), axis=0)


def _partial_sums_kernel(
    x_ref, t_ref, inter_ref, den_ref, *, n_valid, block_rows, row_blocks, ragged
):
    c = pl.program_id(0)          # parallel split (sharded across TCs on v7x)
    j = pl.program_id(1)          # reduction steps within the split
    steps = pl.num_programs(1)

    @pl.when(j == 0)
    def _():
        inter_ref[...] = jnp.zeros_like(inter_ref)
        den_ref[...] = jnp.zeros_like(den_ref)

    # Logical block index.  It may exceed row_blocks - 1 when the split is
    # uneven; the index_map clamps the DMA in-bounds and those duplicate
    # blocks are simply skipped below.
    blk = c * steps + j
    last = row_blocks - 1

    if ragged:
        # Fast path: all full blocks strictly before the ragged last block.
        @pl.when(blk < last)
        def _():
            _block_update(x_ref, t_ref, inter_ref, den_ref, None)

        # Masked path: exactly the last real block (zero-pad tail and any
        # out-of-bounds over-read are killed by the element-index mask).
        @pl.when(blk == last)
        def _():
            shape = (block_rows, _LANE)
            row_i = jax.lax.broadcasted_iota(jnp.int32, shape, 0)
            lane_i = jax.lax.broadcasted_iota(jnp.int32, shape, 1)
            elem = (blk * block_rows + row_i) * _LANE + lane_i
            _block_update(x_ref, t_ref, inter_ref, den_ref, elem < n_valid)
    else:
        @pl.when(blk <= last)
        def _():
            _block_update(x_ref, t_ref, inter_ref, den_ref, None)


@functools.partial(jax.jit, static_argnames=("block_rows", "num_splits"))
def logcosh_dice_loss(inputs, targets, *, block_rows=2048, num_splits=2):
    """Pallas implementation of LogCoshDiceLoss.forward. Returns a scalar f32."""
    x = inputs.reshape(-1)
    t = targets.reshape(-1)
    if t.dtype == jnp.bool_:
        t = t.astype(jnp.float32)

    n = x.shape[0]
    tile = _SUB * _LANE
    n_pad = -(-n // tile) * tile
    pad = n_pad - n
    if pad:
        # Zero-pad purely for (rows, 128) layout; the in-kernel mask on the
        # last block ignores these elements (sigmoid(0)=0.5 never leaks in).
        x = jnp.pad(x, (0, pad))
        t = jnp.pad(t, (0, pad))

    rows = n_pad // _LANE                     # multiple of 8
    block_rows = min(block_rows, rows)        # multiple of 8 (or full dim)
    row_blocks = -(-rows // block_rows)
    num_splits = max(1, min(num_splits, row_blocks))
    steps = -(-row_blocks // num_splits)

    # The last block needs the element mask iff the flat size was ragged or
    # the row count doesn't divide evenly into blocks (over-read garbage).
    ragged = (pad > 0) or (rows % block_rows != 0)

    x2 = x.reshape(rows, _LANE)
    t2 = t.reshape(rows, _LANE)

    def in_map(c, j):
        # Clamp so the DMA always stays in bounds; duplicated (clamped)
        # blocks are skipped inside the kernel.
        return (jnp.minimum(c * steps + j, row_blocks - 1), 0)

    kernel = functools.partial(
        _partial_sums_kernel,
        n_valid=n,
        block_rows=block_rows,
        row_blocks=row_blocks,
        ragged=ragged,
    )

    inter_p, den_p = pl.pallas_call(
        kernel,
        out_shape=(
            jax.ShapeDtypeStruct((num_splits * _SUB, _LANE), jnp.float32),
            jax.ShapeDtypeStruct((num_splits * _SUB, _LANE), jnp.float32),
        ),
        grid=(num_splits, steps),
        in_specs=[
            pl.BlockSpec((block_rows, _LANE), in_map),
            pl.BlockSpec((block_rows, _LANE), in_map),
        ],
        out_specs=(
            pl.BlockSpec((_SUB, _LANE), lambda c, j: (c, 0)),
            pl.BlockSpec((_SUB, _LANE), lambda c, j: (c, 0)),
        ),
        compiler_params=pltpu.CompilerParams(
            dimension_semantics=("parallel", "arbitrary"),
        ),
    )(x2, t2)

    # Tiny O(1) epilogue: dice score + log-cosh over the partial sums.
    smooth = jnp.float32(1.0)
    inter = jnp.sum(inter_p)
    den = jnp.sum(den_p)
    score = (2.0 * inter + smooth) / (den + smooth)
    xl = 1.0 - score
    return jnp.log((jnp.exp(xl) + jnp.exp(-xl)) / 2.0)


def _reference(inputs, targets):
    p = jax.nn.sigmoid(inputs.astype(jnp.float32).reshape(-1))
    t = targets.astype(jnp.float32).reshape(-1)
    smooth = 1.0
    inter = jnp.sum(t * p)
    score = (2.0 * inter + smooth) / (jnp.sum(t) + jnp.sum(p) + smooth)
    x = 1.0 - score
    return jnp.log((jnp.exp(x) + jnp.exp(-x)) / 2.0)


if __name__ == "__main__":
    key = jax.random.PRNGKey(0)
    k1, k2, k3, k4, k5, k6 = jax.random.split(key, 6)

    # Test 1: canonical NCHW shape, f32 logits + binary f32 targets (no mask path).
    inputs = jax.random.normal(k1, (2, 4, 16, 16), dtype=jnp.float32)
    targets = (jax.random.uniform(k2, (2, 4, 16, 16)) > 0.5).astype(jnp.float32)
    loss = logcosh_dice_loss(inputs, targets)
    jax.block_until_ready(loss)
    ref = _reference(inputs, targets)
    assert jnp.allclose(loss, ref, atol=1e-5, rtol=1e-5), (loss, ref)

    # Test 2: ragged size + bf16 logits (exercises masked last block & in-kernel cast).
    inputs2 = jax.random.normal(k3, (2, 3, 15, 17), dtype=jnp.float32).astype(jnp.bfloat16)
    targets2 = (jax.random.uniform(k4, (2, 3, 15, 17)) > 0.5).astype(jnp.float32)
    loss2 = logcosh_dice_loss(inputs2, targets2)
    jax.block_until_ready(loss2)
    ref2 = _reference(inputs2, targets2)
    assert jnp.allclose(loss2, ref2, atol=1e-4, rtol=1e-4), (loss2, ref2)

    # Test 3: multi-split path with clamped (skipped) duplicate blocks + bool targets.
    inputs3 = jax.random.normal(k5, (3, 1, 32, 32), dtype=jnp.float32)
    targets3 = jax.random.uniform(k6, (3, 1, 32, 32)) > 0.5          # bool
    loss3 = logcosh_dice_loss(inputs3, targets3, block_rows=8, num_splits=2)
    jax.block_until_ready(loss3)
    ref3 = _reference(inputs3, targets3)
    assert jnp.allclose(loss3, ref3, atol=1e-5, rtol=1e-5), (loss3, ref3)

    print("KERNEL_OK")
</pallas_src>

<mosaic_0001>
module attributes {stable_mosaic.version = 11 : i64} {
  func.func @_partial_sums_kernel(%arg0: i32, %arg1: i32, %arg2: memref<16x128xf32, #tpu.memory_space<vmem>>, %arg3: memref<16x128xf32, #tpu.memory_space<vmem>>, %arg4: memref<8x128xf32, #tpu.memory_space<vmem>>, %arg5: memref<8x128xf32, #tpu.memory_space<vmem>>) attributes {dimension_semantics = [#tpu.dimension_semantics<parallel>, #tpu.dimension_semantics<arbitrary>], iteration_bounds = array<i64: 1, 1>, scalar_prefetch = 0 : i64, scratch_operands = 0 : i64, tpu.core_type = #tpu.core_type<tc>, window_params = [{transform_indices = @transform_0, window_bounds = array<i64: 16, 128>}, {transform_indices = @transform_1, window_bounds = array<i64: 16, 128>}, {transform_indices = @transform_2, window_bounds = array<i64: 8, 128>}, {transform_indices = @transform_3, window_bounds = array<i64: 8, 128>}]} {
    %c0_i32 = arith.constant 0 : i32
    %0 = arith.cmpi eq, %arg1, %c0_i32 : i32
    %1 = arith.extui %0 : i1 to i32
    %c0_i32_0 = arith.constant 0 : i32
    %2 = arith.cmpi ne, %1, %c0_i32_0 : i32
    scf.if %2 {
      %cst = arith.constant 0.000000e+00 : f32
      %8 = vector.broadcast %cst : f32 to vector<8x128xf32>
      %c0 = arith.constant 0 : index
      %c0_3 = arith.constant 0 : index
      %9 = vector.load %arg4[%c0, %c0_3] : memref<8x128xf32, #tpu.memory_space<vmem>>, vector<8x128xf32>
      tpu.vector_store %arg4[%c0, %c0_3], %8 {strides = array<i32>} : memref<8x128xf32, #tpu.memory_space<vmem>>, vector<8x128xf32>,
      %cst_4 = arith.constant 0.000000e+00 : f32
      %10 = vector.broadcast %cst_4 : f32 to vector<8x128xf32>
      %c0_5 = arith.constant 0 : index
      %c0_6 = arith.constant 0 : index
      %11 = vector.load %arg5[%c0_5, %c0_6] : memref<8x128xf32, #tpu.memory_space<vmem>>, vector<8x128xf32>
      tpu.vector_store %arg5[%c0_5, %c0_6], %10 {strides = array<i32>} : memref<8x128xf32, #tpu.memory_space<vmem>>, vector<8x128xf32>,
    } else {
    }
    %c1_i32 = arith.constant 1 : i32
    %3 = arith.muli %arg0, %c1_i32 : i32
    %4 = arith.addi %3, %arg1 : i32
    %c0_i32_1 = arith.constant 0 : i32
    %5 = arith.cmpi sle, %4, %c0_i32_1 : i32
    %6 = arith.extui %5 : i1 to i32
    %c0_i32_2 = arith.constant 0 : i32
    %7 = arith.cmpi ne, %6, %c0_i32_2 : i32
    scf.if %7 {
      %c0 = arith.constant 0 : index
      %c0_3 = arith.constant 0 : index
      %8 = vector.load %arg2[%c0, %c0_3] : memref<16x128xf32, #tpu.memory_space<vmem>>, vector<16x128xf32>
      %9 = arith.negf %8 : vector<16x128xf32>
      %10 = math.exp %9 : vector<16x128xf32>
      %cst = arith.constant 1.000000e+00 : f32
      %11 = vector.broadcast %cst : f32 to vector<16x128xf32>
      %12 = arith.addf %11, %10 : vector<16x128xf32>
      %13 = arith.divf %11, %12 : vector<16x128xf32>
      %c0_4 = arith.constant 0 : index
      %c0_5 = arith.constant 0 : index
      %14 = vector.load %arg3[%c0_4, %c0_5] : memref<16x128xf32, #tpu.memory_space<vmem>>, vector<16x128xf32>
      %c0_6 = arith.constant 0 : index
      %c0_7 = arith.constant 0 : index
      %15 = vector.load %arg4[%c0_6, %c0_7] : memref<8x128xf32, #tpu.memory_space<vmem>>, vector<8x128xf32>
      %16 = arith.mulf %14, %13 : vector<16x128xf32>
      %17 = vector.shape_cast %16 : vector<16x128xf32> to vector<2x8x128xf32>
      %cst_8 = arith.constant dense<0.000000e+00> : vector<8x128xf32>
      %18 = vector.multi_reduction <add>, %17, %cst_8 [0] : vector<2x8x128xf32> to vector<8x128xf32>
      %19 = arith.addf %15, %18 : vector<8x128xf32>
      %c0_9 = arith.constant 0 : index
      %c0_10 = arith.constant 0 : index
      %20 = vector.load %arg4[%c0_9, %c0_10] : memref<8x128xf32, #tpu.memory_space<vmem>>, vector<8x128xf32>
      tpu.vector_store %arg4[%c0_9, %c0_10], %19 {strides = array<i32>} : memref<8x128xf32, #tpu.memory_space<vmem>>, vector<8x128xf32>,
      %c0_11 = arith.constant 0 : index
      %c0_12 = arith.constant 0 : index
      %21 = vector.load %arg5[%c0_11, %c0_12] : memref<8x128xf32, #tpu.memory_space<vmem>>, vector<8x128xf32>
      %22 = arith.addf %14, %13 : vector<16x128xf32>
      %23 = vector.shape_cast %22 : vector<16x128xf32> to vector<2x8x128xf32>
      %cst_13 = arith.constant dense<0.000000e+00> : vector<8x128xf32>
      %24 = vector.multi_reduction <add>, %23, %cst_13 [0] : vector<2x8x128xf32> to vector<8x128xf32>
      %25 = arith.addf %21, %24 : vector<8x128xf32>
      %c0_14 = arith.constant 0 : index
      %c0_15 = arith.constant 0 : index
      %26 = vector.load %arg5[%c0_14, %c0_15] : memref<8x128xf32, #tpu.memory_space<vmem>>, vector<8x128xf32>
      tpu.vector_store %arg5[%c0_14, %c0_15], %25 {strides = array<i32>} : memref<8x128xf32, #tpu.memory_space<vmem>>, vector<8x128xf32>,
    } else {
    }
    return
  }
  func.func @transform_0(%arg0: i32, %arg1: i32) -> (i32, i32) {
    %c1_i32 = arith.constant 1 : i32
    %0 = arith.muli %arg0, %c1_i32 : i32
    %1 = arith.addi %0, %arg1 : i32
    %c0_i32 = arith.constant 0 : i32
    %2 = arith.minsi %1, %c0_i32 : i32
    %c0_i32_0 = arith.constant 0 : i32
    %c0_i32_1 = arith.constant 0 : i32
    return %2, %c0_i32_0 : i32, i32
  }
  func.func @transform_1(%arg0: i32, %arg1: i32) -> (i32, i32) {
    %c1_i32 = arith.constant 1 : i32
    %0 = arith.muli %arg0, %c1_i32 : i32
    %1 = arith.addi %0, %arg1 : i32
    %c0_i32 = arith.constant 0 : i32
    %2 = arith.minsi %1, %c0_i32 : i32
    %c0_i32_0 = arith.constant 0 : i32
    %c0_i32_1 = arith.constant 0 : i32
    return %2, %c0_i32_0 : i32, i32
  }
  func.func @transform_2(%arg0: i32, %arg1: i32) -> (i32, i32) {
    %c0_i32 = arith.constant 0 : i32
    %c0_i32_0 = arith.constant 0 : i32
    return %arg0, %c0_i32 : i32, i32
  }
  func.func @transform_3(%arg0: i32, %arg1: i32) -> (i32, i32) {
    %c0_i32 = arith.constant 0 : i32
    %c0_i32_0 = arith.constant 0 : i32
    return %arg0, %c0_i32 : i32, i32
  }
}

</mosaic_0001>

<llo_original>
// kernel: logcosh_dice_loss.1
$region0: #{logcosh_dice_loss.1}
  #allocation0 [shape = 'u32[]', space=smem, size = 0x4, offset = 0x4, fixed_abs, tag = 'smem constant byte address 0x4 - core index']
  #allocation1 [shape = 'u32[144,128]{1,0:T(1,128)}', space=vmem, size = 0x12000, scoped, tag = 'internal scratch']
  %s0 = inlined_call_operand.vmem [shape: f32[16,128], index: 0, kind: input, shape index: {}]
  %s1 = inlined_call_operand.vmem [shape: f32[16,128], index: 1, kind: input, shape index: {}]
  %s2 = inlined_call_operand.vmem [shape: f32[8,128], index: 2, kind: output, shape index: {0}]
  %s3 = inlined_call_operand.vmem [shape: f32[8,128], index: 3, kind: output, shape index: {1}]
  %4 = xla_tuple %s2, %s3
  %s5 = sld [smem:[#allocation0]]
  $region34: #{logcosh_dice_loss.1} parent=0
    _
  %s7 = ssub.s32 1, %s5
  %s8 = scalar_select 0, %s7, %s5
  // Predicated region
  $region2: #{logcosh_dice_loss.1} parent=0 // pred_check
    _
  $region3: #{logcosh_dice_loss.1} parent=0 // pred_check_branch
    %10 = sbr.rel (0) target = $region5
  $region4: #{logcosh_dice_loss.1} parent=0 // pred_region
    %s11 = sadd.s32 0, 0
    %p12 = scmp.lt.s32.totalorder %s11, 0
    %s13 = scalar_select %p12, %s11, 0
    %s14 = smul.u32 2, %s13
    %p15 = scmp.lt.s32.totalorder %s14, 1
    %s16 = scalar_select %p15, %s14, 1
    %s17 = smul.addr %s16, 8
    %s18 = scalar_lea.vmem %s0, %s17
    %s19 = sadd.s32 0, 0
    %p20 = scmp.lt.s32.totalorder %s19, 0
    %s21 = scalar_select %p20, %s19, 0
    %s22 = smul.u32 2, %s21
  $region5: #{logcosh_dice_loss.1} parent=0 // pred_fallthru
    _
  // Predicated region
  $region6: #{logcosh_dice_loss.1} parent=0 // pred_check
    _
  $region7: #{logcosh_dice_loss.1} parent=0 // pred_check_branch
    %24 = sbr.rel (0) target = $region9
  $region8: #{logcosh_dice_loss.1} parent=0 // pred_region
    %s25 = sadd.s32 0, 0
    %p26 = scmp.lt.s32.totalorder %s25, 0
    %s27 = scalar_select %p26, %s25, 0
    %s28 = smul.u32 2, %s27
    %p29 = scmp.lt.s32.totalorder %s28, 1
    %s30 = scalar_select %p29, %s28, 1
    %s31 = smul.addr %s30, 8
    %s32 = scalar_lea.vmem %s1, %s31
    %s33 = sadd.s32 0, 0
    %p34 = scmp.lt.s32.totalorder %s33, 0
    %s35 = scalar_select %p34, %s33, 0
    %s36 = smul.u32 2, %s35
  $region9: #{logcosh_dice_loss.1} parent=0 // pred_fallthru
    _
  %s37 = sadd.s32 0, 0
  %p38 = scmp.lt.s32.totalorder %s37, 0
  %s39 = scalar_select %p38, %s37, 0
  %s40 = smul.u32 2, %s39
  %p41 = scmp.lt.s32.totalorder %s40, 1
  %s42 = scalar_select %p41, %s40, 1
  %s43 = smul.addr %s42, 8
  %s44 = scalar_lea.vmem %s0, %s43
  %s45 = sadd.s32 0, 0
  %p46 = scmp.lt.s32.totalorder %s45, 0
  %s47 = scalar_select %p46, %s45, 0
  %s48 = smul.u32 2, %s47
  %p49 = scmp.lt.s32.totalorder %s48, 1
  %s50 = scalar_select %p49, %s48, 1
  %s51 = smul.addr %s50, 8
  %s52 = scalar_lea.vmem %s1, %s51
  %s53 = sadd.s32 0, 0
  %p54 = scmp.lt.s32.totalorder %s53, 0
  %s55 = scalar_select %p54, %s53, 0
  %s56 = smul.u32 2, %s55
  %p57 = scmp.lt.s32.totalorder %s56, 1
  %s58 = scalar_select %p57, %s56, 1
  %s59 = smul.addr %s58, 8
  %s60 = scalar_lea.vmem %s0, %s59
  %s61 = sadd.s32 0, 0
  %p62 = scmp.lt.s32.totalorder %s61, 0
  %s63 = scalar_select %p62, %s61, 0
  %s64 = smul.u32 2, %s63
  %s65 = sadd.s32 0, 0
  %p66 = scmp.lt.s32.totalorder %s65, 0
  %s67 = scalar_select %p66, %s65, 0
  %s68 = smul.u32 2, %s67
  %p69 = scmp.lt.s32.totalorder %s68, 1
  %s70 = scalar_select %p69, %s68, 1
  %s71 = smul.addr %s70, 8
  %s72 = scalar_lea.vmem %s1, %s71
  %s73 = sadd.s32 0, 0
  %p74 = scmp.lt.s32.totalorder %s73, 0
  %s75 = scalar_select %p74, %s73, 0
  %s76 = smul.u32 2, %s75
  %p77 = scmp.eq.s32.totalorder 0, 0
  // Predicated region
  $region10: #{logcosh_dice_loss.1} parent=0 // pred_check
    %p78 = pneg %p77
  $region11: #{logcosh_dice_loss.1} parent=0 // pred_check_branch
    %80 = sbr.rel (%p78) target = $region13
  $region12: #{logcosh_dice_loss.1} parent=0 // pred_region
    %81 = vst [vmem:[%s2] sm:$0xff] 0.0
    %82 = vst [vmem:[%s3] sm:$0xff] 0.0
  $region13: #{logcosh_dice_loss.1} parent=0 // pred_fallthru
    _
  %s83 = sadd.s32 0, 0
  %p84 = scmp.le.s32.totalorder %s83, 0
  // Predicated region
  $region14: #{logcosh_dice_loss.1} parent=0 // pred_check
    %p85 = pneg %p84
  $region15: #{logcosh_dice_loss.1} parent=0 // pred_check_branch
    %87 = sbr.rel (%p85) target = $region17
  $region16: #{logcosh_dice_loss.1} parent=0 // pred_region
    %v88 = vld [vmem:[%s60] sm:$0xff]
    %v89 = vld [vmem:[%s60 + $0x8] sm:$0xff]
    %v90 = vxor.u32 %v88, 2147483648
    %v91 = vxor.u32 %v89, 2147483648
    %v92 = vmul.f32 %v90, 1.442695
    %v93 = vpow.pop %v92
    %v94 = vmul.f32 %v91, 1.442695
    %v95 = vpow.pop %v94
    %v96 = vadd.f32 %v93, 1.0
    %v97 = vadd.f32 %v95, 1.0
    %v98 = vrcp.pop %v96
    %v99 = vmul.f32 1.0, %v98
    %v100 = vrcp.pop %v97
    %v101 = vmul.f32 1.0, %v100
    %v102 = vld [vmem:[%s72] sm:$0xff]
    %v103 = vld [vmem:[%s72 + $0x8] sm:$0xff]
    %v104 = vld [vmem:[%s2] sm:$0xff]
    %v105 = vmul.f32 %v102, %v99
    %v106 = vmul.f32 %v103, %v101
    %v107 = vadd.f32 %v105, %v106
    %v108 = vadd.f32 %v104, %v107
    %109 = vst [vmem:[%s2] sm:$0xff] %v108
    %v110 = vld [vmem:[%s3] sm:$0xff]
    %v111 = vadd.f32 %v102, %v99
    %v112 = vadd.f32 %v103, %v101
    %v113 = vadd.f32 %v111, %v112
    %v114 = vadd.f32 %v110, %v113
    %115 = vst [vmem:[%s3] sm:$0xff] %v114
  $region17: #{logcosh_dice_loss.1} parent=0 // pred_fallthru
    _
  // Predicated region
  $region18: #{logcosh_dice_loss.1} parent=0 // pred_check
    _
  $region19: #{logcosh_dice_loss.1} parent=0 // pred_check_branch
    %117 = sbr.rel (0) target = $region21
  $region20: #{logcosh_dice_loss.1} parent=0 // pred_region
    _
  $region21: #{logcosh_dice_loss.1} parent=0 // pred_fallthru
    _
  // Predicated region
  $region22: #{logcosh_dice_loss.1} parent=0 // pred_check
    _
  $region23: #{logcosh_dice_loss.1} parent=0 // pred_check_branch
    %119 = sbr.rel (0) target = $region25
  $region24: #{logcosh_dice_loss.1} parent=0 // pred_region
    _
  $region25: #{logcosh_dice_loss.1} parent=0 // pred_fallthru
    _
  // Predicated region
  $region26: #{logcosh_dice_loss.1} parent=0 // pred_check
    _
  $region27: #{logcosh_dice_loss.1} parent=0 // pred_check_branch
    %121 = sbr.rel (0) target = $region29
  $region28: #{logcosh_dice_loss.1} parent=0 // pred_region
    _
  $region29: #{logcosh_dice_loss.1} parent=0 // pred_fallthru
    _
  // Predicated region
  $region30: #{logcosh_dice_loss.1} parent=0 // pred_check
    _
  $region31: #{logcosh_dice_loss.1} parent=0 // pred_check_branch
    %123 = sbr.rel (0) target = $region33
  $region32: #{logcosh_dice_loss.1} parent=0 // pred_region
    _
  $region33: #{logcosh_dice_loss.1} parent=0 // pred_fallthru
    _

</llo_original>
